<compile_context>
chip_gen: v7x
topology: tpu7x:2x2x1
jax: 0.10.0
libtpu: 0.0.40
codegen_flags: <defaults>
</compile_context>

<pallas_src>
import jax
import jax.numpy as jnp
import numpy as np
from jax.experimental import pallas as pl
from jax.experimental.pallas import tpu as pltpu


def _round_up(n, m):
    return ((n + m - 1) // m) * m


def _st_param_kernel(x_ref, w_ref, o_ref):
    # x_ref: (1, row_tile, G*I), w_ref: (1, G*I, G*O), o_ref: (1, row_tile, G*O)
    o_ref[0] = jnp.dot(
        x_ref[0], w_ref[0], preferred_element_type=jnp.float32
    ).astype(o_ref.dtype)


def spatiotemporal_parameterization(x, weights1, *, max_row_tile=1024):
    """x: (T, B, I, X) float32; weights1: (X, I, O) float32 -> (T, X, B, O)."""
    T, B, I, X = x.shape
    Xw, Iw, O = weights1.shape
    assert X == Xw and I == Iw, "x last dim must equal modes1; channel dim must match"

    # ---- row (t,b) tiling: pad to a multiple of the tile so VMEM stays bounded.
    rows = T * B
    row_tile = min(max_row_tile, _round_up(rows, 8))
    rows_p = _round_up(rows, row_tile)

    # ---- chunk the x-modes so each chunk's matmul is ~a full 128-lane tile.
    g_target = max(-(-128 // I), -(-128 // O))     # ceil(128/I), ceil(128/O)
    G = X if X <= g_target else g_target
    X_p = _round_up(X, G)
    Xc = X_p // G

    # ---- per-chunk block-diagonal weights: (Xc, G*I, G*O), exact zeros off-diag.
    w_pad = weights1
    if X_p != X:
        w_pad = jnp.pad(w_pad, ((0, X_p - X), (0, 0), (0, 0)))
    w_pad = w_pad.reshape(Xc, G, I, O)
    eye = jnp.eye(G, dtype=jnp.bool_)
    wbd = jnp.where(
        eye[None, :, None, :, None],               # (1, G, 1, G, 1)
        w_pad[:, :, :, None, :],                   # (Xc, G, I, 1, O)
        jnp.zeros((), weights1.dtype),
    ).reshape(Xc, G * I, G * O)

    # ---- activations: (T,B,I,X) -> (Xc, rows_p, G*I), lane-dense rows.
    x2 = jnp.transpose(x, (0, 1, 3, 2)).reshape(rows, X, I)
    pad_r, pad_x = rows_p - rows, X_p - X
    if pad_r or pad_x:
        x2 = jnp.pad(x2, ((0, pad_r), (0, pad_x), (0, 0)))
    x3 = jnp.transpose(x2.reshape(rows_p, Xc, G * I), (1, 0, 2))

    y3 = pl.pallas_call(
        _st_param_kernel,
        out_shape=jax.ShapeDtypeStruct((Xc, rows_p, G * O), x.dtype),
        grid=(Xc, rows_p // row_tile),
        in_specs=[
            pl.BlockSpec((1, row_tile, G * I), lambda c, r: (c, r, 0)),
            # weight tile resident across the inner row loop (same block index).
            pl.BlockSpec((1, G * I, G * O), lambda c, r: (c, 0, 0)),
        ],
        out_specs=pl.BlockSpec((1, row_tile, G * O), lambda c, r: (c, r, 0)),
        compiler_params=pltpu.CompilerParams(
            dimension_semantics=("parallel", "parallel"),
        ),
    )(x3, wbd)

    # ---- (Xc, rows_p, G*O) -> (T*B, X, O) -> (T, X, B, O)  (matches torch 'txbo')
    y = jnp.transpose(y3, (1, 0, 2)).reshape(rows_p, X_p, O)[:rows, :X, :]
    return jnp.transpose(y.reshape(T, B, X, O), (0, 2, 1, 3))


def init_weights(key, nodes1, nodes2, width):
    """Deterministic stand-in for: scale * torch.rand(modes1, in_ch, out_ch)."""
    scale = 1.0 / (nodes1 * nodes2)
    return scale * jax.random.uniform(
        key, (width, nodes1, nodes2), dtype=jnp.float32
    )


if __name__ == "__main__":
    # Small, module-consistent shapes:
    nodes1 = 8      # in_channels (I)
    nodes2 = 8      # out_channels (O)
    width = 16      # modes1 (X) == spatial extent of x's last dim
    T, B = 8, 4     # time steps, batch

    key = jax.random.PRNGKey(0)
    kx, kw = jax.random.split(key)

    x = jax.random.normal(kx, (T, B, nodes1, width), dtype=jnp.float32)
    weights1 = init_weights(kw, nodes1, nodes2, width)

    out = spatiotemporal_parameterization(x, weights1)
    out = jax.block_until_ready(out)

    # Reference (pure JAX, mirrors the PyTorch forward exactly).
    ref = jnp.einsum("txbi,xio->txbo", jnp.transpose(x, (0, 3, 1, 2)), weights1)
    np.testing.assert_allclose(np.asarray(out), np.asarray(ref), rtol=1e-5, atol=1e-5)
    assert out.shape == (T, width, B, nodes2)

    print("KERNEL_OK")
</pallas_src>

<mosaic_0001>
module attributes {stable_mosaic.version = 11 : i64} {
  func.func @_st_param_kernel(%arg0: i32, %arg1: i32, %arg2: memref<1x32x128xf32, #tpu.memory_space<vmem>>, %arg3: memref<1x128x128xf32, #tpu.memory_space<vmem>>, %arg4: memref<1x32x128xf32, #tpu.memory_space<vmem>>) attributes {dimension_semantics = [#tpu.dimension_semantics<parallel>, #tpu.dimension_semantics<parallel>], iteration_bounds = array<i64: 1, 1>, scalar_prefetch = 0 : i64, scratch_operands = 0 : i64, tpu.core_type = #tpu.core_type<tc>, window_params = [{transform_indices = @transform_0, window_bounds = array<i64: 1, 32, 128>}, {transform_indices = @transform_1, window_bounds = array<i64: 1, 128, 128>}, {transform_indices = @transform_2, window_bounds = array<i64: 1, 32, 128>}]} {
    %c0 = arith.constant 0 : index
    %c0_0 = arith.constant 0 : index
    %c0_1 = arith.constant 0 : index
    %0 = vector.load %arg2[%c0, %c0_0, %c0_1] : memref<1x32x128xf32, #tpu.memory_space<vmem>>, vector<1x32x128xf32>
    %1 = vector.shape_cast %0 : vector<1x32x128xf32> to vector<32x128xf32>
    %c0_2 = arith.constant 0 : index
    %c0_3 = arith.constant 0 : index
    %c0_4 = arith.constant 0 : index
    %2 = vector.load %arg3[%c0_2, %c0_3, %c0_4] : memref<1x128x128xf32, #tpu.memory_space<vmem>>, vector<1x128x128xf32>
    %3 = vector.shape_cast %2 : vector<1x128x128xf32> to vector<128x128xf32>
    %cst = arith.constant dense<0.000000e+00> : vector<32x128xf32>
    %4 = tpu.matmul %1, %3, %cst {dimension_numbers = #tpu.dot_dimension_numbers<[1], [0], [0], [1], [0, 0, 1, 1], [], []>} : vector<32x128xf32>, vector<128x128xf32>, vector<32x128xf32> -> vector<32x128xf32>
    %c0_5 = arith.constant 0 : index
    %c0_6 = arith.constant 0 : index
    %c0_7 = arith.constant 0 : index
    %5 = vector.load %arg4[%c0_5, %c0_6, %c0_7] : memref<1x32x128xf32, #tpu.memory_space<vmem>>, vector<1x32x128xf32>
    %6 = vector.shape_cast %5 : vector<1x32x128xf32> to vector<32x128xf32>
    %7 = vector.shape_cast %4 : vector<32x128xf32> to vector<1x32x128xf32>
    tpu.vector_store %arg4[%c0_5, %c0_6, %c0_7], %7 {strides = array<i32>} : memref<1x32x128xf32, #tpu.memory_space<vmem>>, vector<1x32x128xf32>,
    return
  }
  func.func @transform_0(%arg0: i32, %arg1: i32) -> (i32, i32, i32) {
    %c0_i32 = arith.constant 0 : i32
    %c0_i32_0 = arith.constant 0 : i32
    return %arg0, %arg1, %c0_i32 : i32, i32, i32
  }
  func.func @transform_1(%arg0: i32, %arg1: i32) -> (i32, i32, i32) {
    %c0_i32 = arith.constant 0 : i32
    %c0_i32_0 = arith.constant 0 : i32
    %c0_i32_1 = arith.constant 0 : i32
    return %arg0, %c0_i32, %c0_i32_0 : i32, i32, i32
  }
  func.func @transform_2(%arg0: i32, %arg1: i32) -> (i32, i32, i32) {
    %c0_i32 = arith.constant 0 : i32
    %c0_i32_0 = arith.constant 0 : i32
    return %arg0, %arg1, %c0_i32 : i32, i32, i32
  }
}

</mosaic_0001>

<llo_original>
// kernel: tpu_custom_call.1
$region0: #{tpu_custom_call.1}
  #allocation0 [shape = 'u32[]', space=smem, size = 0x4, offset = 0x4, fixed_abs, tag = 'smem constant byte address 0x4 - core index']
  #allocation1 [shape = 'u32[144,128]{1,0:T(1,128)}', space=vmem, size = 0x12000, scoped, tag = 'internal scratch']
  %s0 = inlined_call_operand.hbm [shape: f32[1,32,128], index: 0, kind: input, shape index: {}]
  %s1 = inlined_call_operand.hbm [shape: f32[1,128,128], index: 1, kind: input, shape index: {}]
  %s2 = inlined_call_operand.hbm [shape: f32[1,32,128], index: 2, kind: output, shape index: {}]
  %s3 = sld [smem:[#allocation0]]
  $region26: #{tpu_custom_call.1} parent=0
    _
  %s5 = ssub.s32 1, %s3
  %s6 = scalar_select 0, %s5, %s3
  $region1: #{tpu_custom_call.1} parent=0
    #allocation2 [shape = 'u8[16384]{0}', space=vmem, size = 0x4000, scoped, tag = 'input window, operand 0, single buffered']
    #allocation3 [shape = 's32[1]{0}', space=sflag, size = 0x4, scoped, tag = 'scoped memory for tpu_custom_call.1']
    #allocation4 [shape = 's32[1]{0}', space=sflag, size = 0x4, scoped, tag = 'scoped memory for tpu_custom_call.1']
    #allocation5 [shape = 'u8[65536]{0}', space=vmem, size = 0x10000, scoped, tag = 'input window, operand 1, single buffered']
    #allocation6 [shape = 's32[1]{0}', space=sflag, size = 0x4, scoped, tag = 'scoped memory for tpu_custom_call.1']
    #allocation7 [shape = 'u8[16384]{0}', space=vmem, size = 0x4000, scoped, tag = 'output window, operand 0, single buffered']
    %7 = vsyncpa [#allocation3], 0
    %8 = vsyncpa [#allocation6], 0
    %9 = vsyncpa [#allocation4], 0
    // Predicated region
    $region2: #{tpu_custom_call.1} parent=1 // pred_check
      _
    $region3: #{tpu_custom_call.1} parent=1 // pred_check_branch
      %11 = sbr.rel (0) target = $region5
    $region4: #{tpu_custom_call.1} parent=1 // pred_region
      %s13 = ssub.s32 512, 512
      %14 = vsyncadd [#allocation3], %s13
      %s15 = sshll.u32 [#allocation2], 4
      %s16 = int_to_ptr.vmem [resolvable:$true] %s15
      %21 = dma.hbm_to_vmem [thread:$0]  %s0, 512, %s16, [#allocation3], 128, 128, 8
    $region5: #{tpu_custom_call.1} parent=1 // pred_fallthru
      _
    // Predicated region
    $region6: #{tpu_custom_call.1} parent=1 // pred_check
      _
    $region7: #{tpu_custom_call.1} parent=1 // pred_check_branch
      %23 = sbr.rel (0) target = $region9
    $region8: #{tpu_custom_call.1} parent=1 // pred_region
      %s25 = ssub.s32 2048, 2048
      %26 = vsyncadd [#allocation6], %s25
      %s27 = sshll.u32 [#allocation5], 4
      %s28 = int_to_ptr.vmem [resolvable:$true] %s27
      %33 = dma.hbm_to_vmem [thread:$0]  %s1, 2048, %s28, [#allocation6], 128, 128, 8
    $region9: #{tpu_custom_call.1} parent=1 // pred_fallthru
      _
    // Predicated region
    $region10: #{tpu_custom_call.1} parent=1 // pred_check
      _
    $region11: #{tpu_custom_call.1} parent=1 // pred_check_branch
      %35 = sbr.rel (0) target = $region13
    $region12: #{tpu_custom_call.1} parent=1 // pred_region
      %36 = dma.done [#allocation3], 512
    $region13: #{tpu_custom_call.1} parent=1 // pred_fallthru
      _
    // Predicated region
    $region14: #{tpu_custom_call.1} parent=1 // pred_check
      _
    $region15: #{tpu_custom_call.1} parent=1 // pred_check_branch
      %38 = sbr.rel (0) target = $region17
    $region16: #{tpu_custom_call.1} parent=1 // pred_region
      %39 = dma.done [#allocation6], 2048
    $region17: #{tpu_custom_call.1} parent=1 // pred_fallthru
      _
    %v40 = vld [vmem:[#allocation2] sm:$0xff]
    %v41 = vld [vmem:[#allocation2 + $0x8] sm:$0xff]
    %v42 = vld [vmem:[#allocation2 + $0x10] sm:$0xff]
    %v43 = vld [vmem:[#allocation2 + $0x18] sm:$0xff]
    %v44 = vld [vmem:[#allocation5] sm:$0xff]
    %v45 = vld [vmem:[#allocation5 + $0x8] sm:$0xff]
    %v46 = vld [vmem:[#allocation5 + $0x10] sm:$0xff]
    %v47 = vld [vmem:[#allocation5 + $0x18] sm:$0xff]
    %v48 = vld [vmem:[#allocation5 + $0x20] sm:$0xff]
    %v49 = vld [vmem:[#allocation5 + $0x28] sm:$0xff]
    %v50 = vld [vmem:[#allocation5 + $0x30] sm:$0xff]
    %v51 = vld [vmem:[#allocation5 + $0x38] sm:$0xff]
    %v52 = vld [vmem:[#allocation5 + $0x40] sm:$0xff]
    %v53 = vld [vmem:[#allocation5 + $0x48] sm:$0xff]
    %v54 = vld [vmem:[#allocation5 + $0x50] sm:$0xff]
    %v55 = vld [vmem:[#allocation5 + $0x58] sm:$0xff]
    %v56 = vld [vmem:[#allocation5 + $0x60] sm:$0xff]
    %v57 = vld [vmem:[#allocation5 + $0x68] sm:$0xff]
    %v58 = vld [vmem:[#allocation5 + $0x70] sm:$0xff]
    %v59 = vld [vmem:[#allocation5 + $0x78] sm:$0xff]
    %60 = vmatprep.subr.mxu0 0.0
    %61 = vmatpush1.msra.mxu0 %v44
    %62 = vmatprep.subr.mxu0 0.0
    %63 = vmatpush1.msra.mxu0 %v45
    %64 = vmatprep.subr.mxu0 0.0
    %65 = vmatpush1.msra.mxu0 %v46
    %66 = vmatprep.subr.mxu0 0.0
    %67 = vmatpush1.msra.mxu0 %v47
    %68 = vmatprep.subr.mxu0 0.0
    %69 = vmatpush1.msra.mxu0 %v48
    %70 = vmatprep.subr.mxu0 0.0
    %71 = vmatpush1.msra.mxu0 %v49
    %72 = vmatprep.subr.mxu0 0.0
    %73 = vmatpush1.msra.mxu0 %v50
    %74 = vmatprep.subr.mxu0 0.0
    %75 = vmatpush1.msra.mxu0 %v51
    %76 = vmatprep.subr.mxu0 0.0
    %77 = vmatpush1.msra.mxu0 %v52
    %78 = vmatprep.subr.mxu0 0.0
    %79 = vmatpush1.msra.mxu0 %v53
    %80 = vmatprep.subr.mxu0 0.0
    %81 = vmatpush1.msra.mxu0 %v54
    %82 = vmatprep.subr.mxu0 0.0
    %83 = vmatpush1.msra.mxu0 %v55
    %84 = vmatprep.subr.mxu0 0.0
    %85 = vmatpush1.msra.mxu0 %v56
    %86 = vmatprep.subr.mxu0 0.0
    %87 = vmatpush1.msra.mxu0 %v57
    %88 = vmatprep.subr.mxu0 0.0
    %89 = vmatpush1.msra.mxu0 %v58
    %90 = vmatprep.subr.mxu0 0.0
    %91 = vmatpush1.msra.mxu0 %v59
    %92 = vmatprep.subr.mxu0 0.0
    %93 = vmatpush1.msra.mxu0 0.0
    %94 = vmatprep.subr.mxu0 0.0
    %95 = vmatpush1.msra.mxu0 0.0
    %96 = vmatprep.subr.mxu0 0.0
    %97 = vmatpush1.msra.mxu0 0.0
    %98 = vmatprep.subr.mxu0 0.0
    %99 = vmatpush1.msra.mxu0 0.0
    %100 = vmatprep.subr.mxu0 0.0
    %101 = vmatpush1.msra.mxu0 0.0
    %102 = vmatprep.subr.mxu0 0.0
    %103 = vmatpush1.msra.mxu0 0.0
    %104 = vmatprep.subr.mxu0 0.0
    %105 = vmatpush1.msra.mxu0 0.0
    %106 = vmatprep.subr.mxu0 0.0
    %107 = vmatpush1.msra.mxu0 0.0
    %108 = vmatprep.subr.mxu0 0.0
    %109 = vmatpush1.msra.mxu0 0.0
    %110 = vmatprep.subr.mxu0 0.0
    %111 = vmatpush1.msra.mxu0 0.0
    %112 = vmatprep.subr.mxu0 0.0
    %113 = vmatpush1.msra.mxu0 0.0
    %114 = vmatprep.subr.mxu0 0.0
    %115 = vmatpush1.msra.mxu0 0.0
    %116 = vmatprep.subr.mxu0 0.0
    %117 = vmatpush1.msra.mxu0 0.0
    %118 = vmatprep.subr.mxu0 0.0
    %119 = vmatpush1.msra.mxu0 0.0
    %120 = vmatprep.subr.mxu0 0.0
    %121 = vmatpush1.msra.mxu0 0.0
    %122 = vmatprep.subr.mxu0 0.0
    %123 = vmatpush1.msra.mxu0 0.0
    %124 = vmatprep.mubr.f32.mxu0 0.0
    %125 = vmatmul.mubr.f32.gmra.mrb[0].mxu0 %v40
    %v126 = vpop.f32.mrb[0].mxu0
    %v127 = vadd.f32 0.0, %v126
    %v128 = vpop.f32.mrb[0].mxu0
    %129 = vmatprep.mubr.f32.mxu0 0.0
    %130 = vmatmul.mubr.f32.gmra.mrb[0].mxu0 %v41
    %v131 = vpop.f32.mrb[0].mxu0
    %v132 = vadd.f32 0.0, %v131
    %v133 = vpop.f32.mrb[0].mxu0
    %134 = vmatprep.mubr.f32.mxu0 0.0
    %135 = vmatmul.mubr.f32.gmra.mrb[0].mxu0 %v42
    %v136 = vpop.f32.mrb[0].mxu0
    %v137 = vadd.f32 0.0, %v136
    %v138 = vpop.f32.mrb[0].mxu0
    %139 = vmatprep.mubr.f32.mxu0 0.0
    %140 = vmatmul.mubr.f32.gmra.mrb[0].mxu0 %v43
    %v141 = vpop.f32.mrb[0].mxu0
    %v142 = vadd.f32 0.0, %v141
    %v143 = vpop.f32.mrb[0].mxu0
    %144 = vdwg.mxu0
    %145 = vst [vmem:[#allocation7] sm:$0xff] %v127
    %146 = vst [vmem:[#allocation7 + $0x8] sm:$0xff] %v132
    %147 = vst [vmem:[#allocation7 + $0x10] sm:$0xff] %v137
    %148 = vst [vmem:[#allocation7 + $0x18] sm:$0xff] %v142
    // Predicated region
    $region18: #{tpu_custom_call.1} parent=1 // pred_check
      _
    $region19: #{tpu_custom_call.1} parent=1 // pred_check_branch
      %150 = sbr.rel (0) target = $region21
    $region20: #{tpu_custom_call.1} parent=1 // pred_region
      %s152 = ssub.s32 512, 512
      %153 = vsyncadd [#allocation4], %s152
      %s154 = sshll.u32 [#allocation7], 4
      %s155 = int_to_ptr.vmem [resolvable:$true] %s154
      %160 = dma.vmem_to_hbm [thread:$0]  %s155, 512, %s2, [#allocation4], 128, 128, 8
    $region21: #{tpu_custom_call.1} parent=1 // pred_fallthru
      _
    // Predicated region
    $region22: #{tpu_custom_call.1} parent=1 // pred_check
      _
    $region23: #{tpu_custom_call.1} parent=1 // pred_check_branch
      %162 = sbr.rel (0) target = $region25
    $region24: #{tpu_custom_call.1} parent=1 // pred_region
      %163 = dma.done [#allocation4], 512
    $region25: #{tpu_custom_call.1} parent=1 // pred_fallthru
      _
    %164 = vsyncpa [#allocation3], 1
    %165 = vsyncpa [#allocation6], 1
    %166 = vsyncpa [#allocation4], 1

</llo_original>
